<compile_context>
chip_gen: v7x
topology: tpu7x:2x2x1
jax: 0.10.0
libtpu: 0.0.40
codegen_flags: <defaults>
</compile_context>

<pallas_src>
import functools

import jax
import jax.numpy as jnp
import numpy as np
from jax.experimental import pallas as pl
from jax.experimental.pallas import tpu as pltpu


def _ipm_loss_kernel(fake_ref, real_ref, out_ref,
                     acc_sf, acc_qf, acc_sr, acc_qr, acc_e,
                     *, lsgan: bool, importance_sampling: bool,
                     fake_label: float, valid_label: float,
                     total_b: int, total_n: int):
    i = pl.program_id(0)

    @pl.when(i == 0)
    def _init():
        acc_sf[...] = jnp.zeros_like(acc_sf)
        acc_qf[...] = jnp.zeros_like(acc_qf)
        acc_sr[...] = jnp.zeros_like(acc_sr)
        acc_qr[...] = jnp.zeros_like(acc_qr)
        acc_e[...] = jnp.zeros_like(acc_e)

    # Native-dtype DMA, f32 accumulation inside the kernel.
    fake = fake_ref[...].astype(jnp.float32)   # (TB, N)
    real = real_ref[...].astype(jnp.float32)   # (TB, N)

    inv_n = 1.0 / total_n
    rmean_f = jnp.sum(fake, axis=1, keepdims=True) * inv_n   # (TB, 1)
    rmean_r = jnp.sum(real, axis=1, keepdims=True) * inv_n   # (TB, 1)

    acc_sf[...] += jnp.sum(rmean_f, axis=0, keepdims=True)
    acc_qf[...] += jnp.sum(rmean_f * rmean_f, axis=0, keepdims=True)
    acc_sr[...] += jnp.sum(rmean_r, axis=0, keepdims=True)
    acc_qr[...] += jnp.sum(rmean_r * rmean_r, axis=0, keepdims=True)

    if importance_sampling:
        e = jnp.exp(-fake) + jnp.exp(-real)                   # EUP work per tile
        acc_e[...] += jnp.sum(jnp.sum(e, axis=1, keepdims=True),
                              axis=0, keepdims=True)

    @pl.when(i == pl.num_programs(0) - 1)
    def _finalize():
        inv_b = 1.0 / total_b
        mean_f = acc_sf[...] * inv_b      # (1,1) global mean of fake row-means
        mean_r = acc_sr[...] * inv_b      # (1,1) global mean of real row-means

        if importance_sampling:
            z = jnp.log(1e-8 + acc_e[...])
        else:
            z = jnp.zeros_like(mean_f)

        if lsgan:
            # MSE(ed_fake, fake_label): ed_fake[b] = rmean_f[b] - mean_all(real)
            #   -> mean_b (rmean_f[b] - c_f)^2 with c_f = mean_r + fake_label
            #   = E[rmean_f^2] - 2 c_f E[rmean_f] + c_f^2
            c_f = mean_r + fake_label
            c_r = mean_f + valid_label
            mse_f = acc_qf[...] * inv_b - 2.0 * c_f * mean_f + c_f * c_f
            mse_r = acc_qr[...] * inv_b - 2.0 * c_r * mean_r + c_r * c_r
            loss = z + 0.5 * (mse_f + mse_r)
        else:
            # ed_real.mean() = mean_b(rmean_r[b]) - mean_all(fake)
            loss = z + (mean_r - mean_f)

        out_ref[...] = loss


def _choose_batch_tile(B, N, itemsize, budget_bytes=2 << 20):
    """Pick a batch-tile: multiple-of-8 divisor of B with block <= ~2 MiB,
    falling back to the full batch (always a legal block shape)."""
    if B * N * itemsize <= budget_bytes:
        return B
    cap = max(8, budget_bytes // max(1, N * itemsize))
    best = 0
    tb = 8
    while tb <= min(B, cap):
        if B % tb == 0:
            best = tb
        tb += 8
    return best if best > 0 else B


def ipm_backward_loss(fake, real, *, lsgan=True, importance_sampling=False,
                      competitive=False, tile_b=None):
    """JAX/Pallas equivalent of IPMBackwardLoss(lsgan, importance_sampling,
    dtype, competitive).forward(_, fake, real). Returns an f32 scalar."""
    B, N = fake.shape
    assert real.shape == (B, N)

    if tile_b is None:
        tile_b = _choose_batch_tile(B, N, fake.dtype.itemsize)
    assert B % tile_b == 0 and (tile_b == B or tile_b % 8 == 0), \
        f"bad batch tile {tile_b} for B={B}"

    # Module buffers are fully determined at trace time -> bake as constants.
    valid_label = 1.0
    fake_label = 0.0 if competitive else -1.0

    kernel = functools.partial(
        _ipm_loss_kernel,
        lsgan=lsgan, importance_sampling=importance_sampling,
        fake_label=fake_label, valid_label=valid_label,
        total_b=B, total_n=N)

    grid = (B // tile_b,)
    out = pl.pallas_call(
        kernel,
        out_shape=jax.ShapeDtypeStruct((1, 1), jnp.float32),
        grid_spec=pltpu.PrefetchScalarGridSpec(
            num_scalar_prefetch=0,
            grid=grid,
            in_specs=[
                pl.BlockSpec((tile_b, N), lambda i: (i, 0)),   # fake
                pl.BlockSpec((tile_b, N), lambda i: (i, 0)),   # real
            ],
            out_specs=pl.BlockSpec((1, 1), lambda i: (0, 0)),
            scratch_shapes=[pltpu.VMEM((1, 1), jnp.float32)] * 5,
        ),
        compiler_params=pltpu.CompilerParams(
            dimension_semantics=("arbitrary",),
            vmem_limit_bytes=32 * 1024 * 1024),
    )(fake, real)
    return out[0, 0]


def _reference(fake, real, *, lsgan, importance_sampling, competitive):
    fake = fake.astype(jnp.float32)
    real = real.astype(jnp.float32)
    ed_fake = (fake - real.mean(0, keepdims=True)).mean(1, keepdims=True)
    ed_real = (real - fake.mean(0, keepdims=True)).mean(1, keepdims=True)
    z = (jnp.log(1e-8 + jnp.exp(-fake).sum() + jnp.exp(-real).sum())
         if importance_sampling else 0.0)
    if lsgan:
        fake_lbl = 0.0 if competitive else -1.0
        return z + (jnp.mean((ed_fake - fake_lbl) ** 2)
                    + jnp.mean((ed_real - 1.0) ** 2)) / 2
    return z + ed_real.mean()


if __name__ == "__main__":
    key = jax.random.PRNGKey(0)
    kf, kr = jax.random.split(key)

    cases = []

    # Small shape, single grid step.
    B, N = 8, 128
    fake = jax.random.normal(kf, (B, N), dtype=jnp.float32)
    real = jax.random.normal(kr, (B, N), dtype=jnp.float32) + 0.5
    for cfg in (dict(lsgan=True, importance_sampling=False, competitive=False),
                dict(lsgan=True, importance_sampling=True, competitive=True),
                dict(lsgan=False, importance_sampling=True, competitive=False)):
        cases.append((fake, real, cfg, None))

    # Slightly larger batch to exercise the multi-step streaming accumulators.
    kf2, kr2 = jax.random.split(jax.random.PRNGKey(1))
    B2, N2 = 32, 128
    fake2 = jax.random.normal(kf2, (B2, N2), dtype=jnp.float32)
    real2 = jax.random.normal(kr2, (B2, N2), dtype=jnp.float32) + 0.5
    cases.append((fake2, real2,
                  dict(lsgan=True, importance_sampling=True, competitive=False),
                  8))

    for f, r, cfg, tb in cases:
        out = ipm_backward_loss(f, r, tile_b=tb, **cfg)
        out = jax.block_until_ready(out)
        ref = _reference(f, r, **cfg)
        np.testing.assert_allclose(np.asarray(out), np.asarray(ref),
                                   rtol=1e-5, atol=1e-5)

    print("KERNEL_OK")
</pallas_src>

<mosaic_0001>
module attributes {stable_mosaic.version = 11 : i64} {
  func.func @_ipm_loss_kernel(%arg0: i32, %arg1: memref<8x128xf32, #tpu.memory_space<vmem>>, %arg2: memref<8x128xf32, #tpu.memory_space<vmem>>, %arg3: memref<1x1xf32, #tpu.memory_space<vmem>>, %arg4: memref<1x1xf32, #tpu.memory_space<vmem>>, %arg5: memref<1x1xf32, #tpu.memory_space<vmem>>, %arg6: memref<1x1xf32, #tpu.memory_space<vmem>>, %arg7: memref<1x1xf32, #tpu.memory_space<vmem>>, %arg8: memref<1x1xf32, #tpu.memory_space<vmem>>) attributes {dimension_semantics = [#tpu.dimension_semantics<arbitrary>], iteration_bounds = array<i64: 1>, scalar_prefetch = 0 : i64, scratch_operands = 5 : i64, tpu.core_type = #tpu.core_type<tc>, window_params = [{transform_indices = @transform_0, window_bounds = array<i64: 8, 128>}, {transform_indices = @transform_1, window_bounds = array<i64: 8, 128>}, {pipeline_mode = #tpu.pipeline_mode<synchronous>, transform_indices = @transform_2, window_bounds = array<i64: 1, 1>}]} {
    %c0_i32 = arith.constant 0 : i32
    %0 = arith.cmpi eq, %arg0, %c0_i32 : i32
    %1 = arith.extui %0 : i1 to i32
    %c0_i32_0 = arith.constant 0 : i32
    %2 = arith.cmpi ne, %1, %c0_i32_0 : i32
    scf.if %2 {
      %cst_29 = arith.constant 0.000000e+00 : f32
      %38 = vector.broadcast %cst_29 : f32 to vector<1x1xf32>
      %c0_30 = arith.constant 0 : index
      %c0_31 = arith.constant 0 : index
      %39 = vector.load %arg4[%c0_30, %c0_31] : memref<1x1xf32, #tpu.memory_space<vmem>>, vector<1x1xf32>
      tpu.vector_store %arg4[%c0_30, %c0_31], %38 {strides = array<i32>} : memref<1x1xf32, #tpu.memory_space<vmem>>, vector<1x1xf32>,
      %cst_32 = arith.constant 0.000000e+00 : f32
      %40 = vector.broadcast %cst_32 : f32 to vector<1x1xf32>
      %c0_33 = arith.constant 0 : index
      %c0_34 = arith.constant 0 : index
      %41 = vector.load %arg5[%c0_33, %c0_34] : memref<1x1xf32, #tpu.memory_space<vmem>>, vector<1x1xf32>
      tpu.vector_store %arg5[%c0_33, %c0_34], %40 {strides = array<i32>} : memref<1x1xf32, #tpu.memory_space<vmem>>, vector<1x1xf32>,
      %cst_35 = arith.constant 0.000000e+00 : f32
      %42 = vector.broadcast %cst_35 : f32 to vector<1x1xf32>
      %c0_36 = arith.constant 0 : index
      %c0_37 = arith.constant 0 : index
      %43 = vector.load %arg6[%c0_36, %c0_37] : memref<1x1xf32, #tpu.memory_space<vmem>>, vector<1x1xf32>
      tpu.vector_store %arg6[%c0_36, %c0_37], %42 {strides = array<i32>} : memref<1x1xf32, #tpu.memory_space<vmem>>, vector<1x1xf32>,
      %cst_38 = arith.constant 0.000000e+00 : f32
      %44 = vector.broadcast %cst_38 : f32 to vector<1x1xf32>
      %c0_39 = arith.constant 0 : index
      %c0_40 = arith.constant 0 : index
      %45 = vector.load %arg7[%c0_39, %c0_40] : memref<1x1xf32, #tpu.memory_space<vmem>>, vector<1x1xf32>
      tpu.vector_store %arg7[%c0_39, %c0_40], %44 {strides = array<i32>} : memref<1x1xf32, #tpu.memory_space<vmem>>, vector<1x1xf32>,
      %cst_41 = arith.constant 0.000000e+00 : f32
      %46 = vector.broadcast %cst_41 : f32 to vector<1x1xf32>
      %c0_42 = arith.constant 0 : index
      %c0_43 = arith.constant 0 : index
      %47 = vector.load %arg8[%c0_42, %c0_43] : memref<1x1xf32, #tpu.memory_space<vmem>>, vector<1x1xf32>
      tpu.vector_store %arg8[%c0_42, %c0_43], %46 {strides = array<i32>} : memref<1x1xf32, #tpu.memory_space<vmem>>, vector<1x1xf32>,
    } else {
    }
    %c0 = arith.constant 0 : index
    %c0_1 = arith.constant 0 : index
    %3 = vector.load %arg1[%c0, %c0_1] : memref<8x128xf32, #tpu.memory_space<vmem>>, vector<8x128xf32>
    %c0_2 = arith.constant 0 : index
    %c0_3 = arith.constant 0 : index
    %4 = vector.load %arg2[%c0_2, %c0_3] : memref<8x128xf32, #tpu.memory_space<vmem>>, vector<8x128xf32>
    %cst = arith.constant dense<0.000000e+00> : vector<8xf32>
    %5 = vector.multi_reduction <add>, %3, %cst [1] : vector<8x128xf32> to vector<8xf32>
    %6 = vector.shape_cast %5 : vector<8xf32> to vector<8x1xf32>
    %cst_4 = arith.constant 7.812500e-03 : f32
    %7 = vector.broadcast %cst_4 : f32 to vector<8x1xf32>
    %8 = arith.mulf %6, %7 : vector<8x1xf32>
    %cst_5 = arith.constant dense<0.000000e+00> : vector<8xf32>
    %9 = vector.multi_reduction <add>, %4, %cst_5 [1] : vector<8x128xf32> to vector<8xf32>
    %10 = vector.shape_cast %9 : vector<8xf32> to vector<8x1xf32>
    %cst_6 = arith.constant 7.812500e-03 : f32
    %11 = vector.broadcast %cst_6 : f32 to vector<8x1xf32>
    %12 = arith.mulf %10, %11 : vector<8x1xf32>
    %c0_7 = arith.constant 0 : index
    %c0_8 = arith.constant 0 : index
    %13 = vector.load %arg4[%c0_7, %c0_8] : memref<1x1xf32, #tpu.memory_space<vmem>>, vector<1x1xf32>
    %cst_9 = arith.constant dense<0.000000e+00> : vector<1xf32>
    %14 = vector.multi_reduction <add>, %8, %cst_9 [0] : vector<8x1xf32> to vector<1xf32>
    %15 = vector.shape_cast %14 : vector<1xf32> to vector<1x1xf32>
    %16 = arith.addf %13, %15 : vector<1x1xf32>
    %c0_10 = arith.constant 0 : index
    %c0_11 = arith.constant 0 : index
    %17 = vector.load %arg4[%c0_10, %c0_11] : memref<1x1xf32, #tpu.memory_space<vmem>>, vector<1x1xf32>
    tpu.vector_store %arg4[%c0_10, %c0_11], %16 {strides = array<i32>} : memref<1x1xf32, #tpu.memory_space<vmem>>, vector<1x1xf32>,
    %c0_12 = arith.constant 0 : index
    %c0_13 = arith.constant 0 : index
    %18 = vector.load %arg5[%c0_12, %c0_13] : memref<1x1xf32, #tpu.memory_space<vmem>>, vector<1x1xf32>
    %19 = arith.mulf %8, %8 : vector<8x1xf32>
    %cst_14 = arith.constant dense<0.000000e+00> : vector<1xf32>
    %20 = vector.multi_reduction <add>, %19, %cst_14 [0] : vector<8x1xf32> to vector<1xf32>
    %21 = vector.shape_cast %20 : vector<1xf32> to vector<1x1xf32>
    %22 = arith.addf %18, %21 : vector<1x1xf32>
    %c0_15 = arith.constant 0 : index
    %c0_16 = arith.constant 0 : index
    %23 = vector.load %arg5[%c0_15, %c0_16] : memref<1x1xf32, #tpu.memory_space<vmem>>, vector<1x1xf32>
    tpu.vector_store %arg5[%c0_15, %c0_16], %22 {strides = array<i32>} : memref<1x1xf32, #tpu.memory_space<vmem>>, vector<1x1xf32>,
    %c0_17 = arith.constant 0 : index
    %c0_18 = arith.constant 0 : index
    %24 = vector.load %arg6[%c0_17, %c0_18] : memref<1x1xf32, #tpu.memory_space<vmem>>, vector<1x1xf32>
    %cst_19 = arith.constant dense<0.000000e+00> : vector<1xf32>
    %25 = vector.multi_reduction <add>, %12, %cst_19 [0] : vector<8x1xf32> to vector<1xf32>
    %26 = vector.shape_cast %25 : vector<1xf32> to vector<1x1xf32>
    %27 = arith.addf %24, %26 : vector<1x1xf32>
    %c0_20 = arith.constant 0 : index
    %c0_21 = arith.constant 0 : index
    %28 = vector.load %arg6[%c0_20, %c0_21] : memref<1x1xf32, #tpu.memory_space<vmem>>, vector<1x1xf32>
    tpu.vector_store %arg6[%c0_20, %c0_21], %27 {strides = array<i32>} : memref<1x1xf32, #tpu.memory_space<vmem>>, vector<1x1xf32>,
    %c0_22 = arith.constant 0 : index
    %c0_23 = arith.constant 0 : index
    %29 = vector.load %arg7[%c0_22, %c0_23] : memref<1x1xf32, #tpu.memory_space<vmem>>, vector<1x1xf32>
    %30 = arith.mulf %12, %12 : vector<8x1xf32>
    %cst_24 = arith.constant dense<0.000000e+00> : vector<1xf32>
    %31 = vector.multi_reduction <add>, %30, %cst_24 [0] : vector<8x1xf32> to vector<1xf32>
    %32 = vector.shape_cast %31 : vector<1xf32> to vector<1x1xf32>
    %33 = arith.addf %29, %32 : vector<1x1xf32>
    %c0_25 = arith.constant 0 : index
    %c0_26 = arith.constant 0 : index
    %34 = vector.load %arg7[%c0_25, %c0_26] : memref<1x1xf32, #tpu.memory_space<vmem>>, vector<1x1xf32>
    tpu.vector_store %arg7[%c0_25, %c0_26], %33 {strides = array<i32>} : memref<1x1xf32, #tpu.memory_space<vmem>>, vector<1x1xf32>,
    %c0_i32_27 = arith.constant 0 : i32
    %35 = arith.cmpi eq, %arg0, %c0_i32_27 : i32
    %36 = arith.extui %35 : i1 to i32
    %c0_i32_28 = arith.constant 0 : i32
    %37 = arith.cmpi ne, %36, %c0_i32_28 : i32
    scf.if %37 {
      %c0_29 = arith.constant 0 : index
      %c0_30 = arith.constant 0 : index
      %38 = vector.load %arg4[%c0_29, %c0_30] : memref<1x1xf32, #tpu.memory_space<vmem>>, vector<1x1xf32>
      %cst_31 = arith.constant 1.250000e-01 : f32
      %39 = vector.broadcast %cst_31 : f32 to vector<1x1xf32>
      %40 = arith.mulf %38, %39 : vector<1x1xf32>
      %c0_32 = arith.constant 0 : index
      %c0_33 = arith.constant 0 : index
      %41 = vector.load %arg6[%c0_32, %c0_33] : memref<1x1xf32, #tpu.memory_space<vmem>>, vector<1x1xf32>
      %cst_34 = arith.constant 1.250000e-01 : f32
      %42 = vector.broadcast %cst_34 : f32 to vector<1x1xf32>
      %43 = arith.mulf %41, %42 : vector<1x1xf32>
      %cst_35 = arith.constant 0.000000e+00 : f32
      %44 = vector.broadcast %cst_35 : f32 to vector<1x1xf32>
      %cst_36 = arith.constant -1.000000e+00 : f32
      %45 = vector.broadcast %cst_36 : f32 to vector<1x1xf32>
      %46 = arith.addf %43, %45 : vector<1x1xf32>
      %cst_37 = arith.constant 1.000000e+00 : f32
      %47 = vector.broadcast %cst_37 : f32 to vector<1x1xf32>
      %48 = arith.addf %40, %47 : vector<1x1xf32>
      %c0_38 = arith.constant 0 : index
      %c0_39 = arith.constant 0 : index
      %49 = vector.load %arg5[%c0_38, %c0_39] : memref<1x1xf32, #tpu.memory_space<vmem>>, vector<1x1xf32>
      %cst_40 = arith.constant 1.250000e-01 : f32
      %50 = vector.broadcast %cst_40 : f32 to vector<1x1xf32>
      %51 = arith.mulf %49, %50 : vector<1x1xf32>
      %cst_41 = arith.constant 2.000000e+00 : f32
      %52 = vector.broadcast %cst_41 : f32 to vector<1x1xf32>
      %53 = arith.mulf %52, %46 : vector<1x1xf32>
      %54 = arith.mulf %53, %40 : vector<1x1xf32>
      %55 = arith.subf %51, %54 : vector<1x1xf32>
      %56 = arith.mulf %46, %46 : vector<1x1xf32>
      %57 = arith.addf %55, %56 : vector<1x1xf32>
      %c0_42 = arith.constant 0 : index
      %c0_43 = arith.constant 0 : index
      %58 = vector.load %arg7[%c0_42, %c0_43] : memref<1x1xf32, #tpu.memory_space<vmem>>, vector<1x1xf32>
      %cst_44 = arith.constant 1.250000e-01 : f32
      %59 = vector.broadcast %cst_44 : f32 to vector<1x1xf32>
      %60 = arith.mulf %58, %59 : vector<1x1xf32>
      %cst_45 = arith.constant 2.000000e+00 : f32
      %61 = vector.broadcast %cst_45 : f32 to vector<1x1xf32>
      %62 = arith.mulf %61, %48 : vector<1x1xf32>
      %63 = arith.mulf %62, %43 : vector<1x1xf32>
      %64 = arith.subf %60, %63 : vector<1x1xf32>
      %65 = arith.mulf %48, %48 : vector<1x1xf32>
      %66 = arith.addf %64, %65 : vector<1x1xf32>
      %67 = arith.addf %57, %66 : vector<1x1xf32>
      %cst_46 = arith.constant 5.000000e-01 : f32
      %68 = vector.broadcast %cst_46 : f32 to vector<1x1xf32>
      %69 = arith.mulf %68, %67 : vector<1x1xf32>
      %70 = arith.addf %44, %69 : vector<1x1xf32>
      %c0_47 = arith.constant 0 : index
      %c0_48 = arith.constant 0 : index
      %71 = vector.load %arg3[%c0_47, %c0_48] : memref<1x1xf32, #tpu.memory_space<vmem>>, vector<1x1xf32>
      tpu.vector_store %arg3[%c0_47, %c0_48], %70 {strides = array<i32>} : memref<1x1xf32, #tpu.memory_space<vmem>>, vector<1x1xf32>,
    } else {
    }
    return
  }
  func.func @transform_0(%arg0: i32) -> (i32, i32) {
    %c0_i32 = arith.constant 0 : i32
    %c0_i32_0 = arith.constant 0 : i32
    return %arg0, %c0_i32 : i32, i32
  }
  func.func @transform_1(%arg0: i32) -> (i32, i32) {
    %c0_i32 = arith.constant 0 : i32
    %c0_i32_0 = arith.constant 0 : i32
    return %arg0, %c0_i32 : i32, i32
  }
  func.func @transform_2(%arg0: i32) -> (i32, i32) {
    %c0_i32 = arith.constant 0 : i32
    %c0_i32_0 = arith.constant 0 : i32
    %c0_i32_1 = arith.constant 0 : i32
    return %c0_i32, %c0_i32_0 : i32, i32
  }
}

</mosaic_0001>

<llo_original>
// kernel: tpu_custom_call.1
$region0: #{tpu_custom_call.1}
  #allocation0 [shape = 'u32[]', space=smem, size = 0x4, offset = 0x4, fixed_abs, tag = 'smem constant byte address 0x4 - core index']
  #allocation1 [shape = 'u32[144,128]{1,0:T(1,128)}', space=vmem, size = 0x12000, scoped, tag = 'internal scratch']
  #allocation2 [shape = 'f32[1,1]{1,0:T(1,128)}', space=vmem, size = 0x200, scoped, tag = 'scratch operand']
  #allocation3 [shape = 'f32[1,1]{1,0:T(1,128)}', space=vmem, size = 0x200, scoped, tag = 'scratch operand']
  #allocation4 [shape = 'f32[1,1]{1,0:T(1,128)}', space=vmem, size = 0x200, scoped, tag = 'scratch operand']
  #allocation5 [shape = 'f32[1,1]{1,0:T(1,128)}', space=vmem, size = 0x200, scoped, tag = 'scratch operand']
  #allocation6 [shape = 'f32[1,1]{1,0:T(1,128)}', space=vmem, size = 0x200, scoped, tag = 'scratch operand']
  %s0 = inlined_call_operand.hbm [shape: f32[8,128], index: 0, kind: input, shape index: {}]
  %s1 = inlined_call_operand.hbm [shape: f32[8,128], index: 1, kind: input, shape index: {}]
  %s2 = inlined_call_operand.hbm [shape: f32[1,1], index: 2, kind: output, shape index: {}]
  %s3 = sld [smem:[#allocation0]]
  $region34: #{tpu_custom_call.1} parent=0
    _
  %s5 = ssub.s32 1, %s3
  %s6 = scalar_select 0, %s5, %s3
  $region1: #{tpu_custom_call.1} parent=0
    #allocation7 [shape = 'u8[4096]{0}', space=vmem, size = 0x1000, scoped, tag = 'input window, operand 0, single buffered']
    #allocation8 [shape = 's32[1]{0}', space=sflag, size = 0x4, scoped, tag = 'scoped memory for tpu_custom_call.1']
    #allocation9 [shape = 's32[1]{0}', space=sflag, size = 0x4, scoped, tag = 'scoped memory for tpu_custom_call.1']
    #allocation10 [shape = 'u8[4096]{0}', space=vmem, size = 0x1000, scoped, tag = 'input window, operand 1, single buffered']
    #allocation11 [shape = 's32[1]{0}', space=sflag, size = 0x4, scoped, tag = 'scoped memory for tpu_custom_call.1']
    #allocation12 [shape = 'u8[512]{0}', space=vmem, size = 0x400, scoped, tag = 'output window, operand 0, single buffered']
    %7 = vsyncpa [#allocation8], 0
    %8 = vsyncpa [#allocation11], 0
    %9 = vsyncpa [#allocation9], 0
    // Predicated region
    $region2: #{tpu_custom_call.1} parent=1 // pred_check
      _
    $region3: #{tpu_custom_call.1} parent=1 // pred_check_branch
      %11 = sbr.rel (0) target = $region5
    $region4: #{tpu_custom_call.1} parent=1 // pred_region
      %s13 = ssub.s32 128, 128
      %14 = vsyncadd [#allocation8], %s13
      %s16 = sshll.u32 [#allocation7], 4
      %s17 = int_to_ptr.vmem [resolvable:$true] %s16
      %19 = dma.hbm_to_vmem [thread:$0]  %s0, 128, %s17, [#allocation8]
    $region5: #{tpu_custom_call.1} parent=1 // pred_fallthru
      _
    // Predicated region
    $region6: #{tpu_custom_call.1} parent=1 // pred_check
      _
    $region7: #{tpu_custom_call.1} parent=1 // pred_check_branch
      %21 = sbr.rel (0) target = $region9
    $region8: #{tpu_custom_call.1} parent=1 // pred_region
      %s23 = ssub.s32 128, 128
      %24 = vsyncadd [#allocation11], %s23
      %s26 = sshll.u32 [#allocation10], 4
      %s27 = int_to_ptr.vmem [resolvable:$true] %s26
      %29 = dma.hbm_to_vmem [thread:$0]  %s1, 128, %s27, [#allocation11]
    $region9: #{tpu_custom_call.1} parent=1 // pred_fallthru
      _
    // Predicated region
    $region10: #{tpu_custom_call.1} parent=1 // pred_check
      _
    $region11: #{tpu_custom_call.1} parent=1 // pred_check_branch
      %31 = sbr.rel (0) target = $region13
    $region12: #{tpu_custom_call.1} parent=1 // pred_region
      %32 = dma.done [#allocation8], 128
    $region13: #{tpu_custom_call.1} parent=1 // pred_fallthru
      _
    // Predicated region
    $region14: #{tpu_custom_call.1} parent=1 // pred_check
      _
    $region15: #{tpu_custom_call.1} parent=1 // pred_check_branch
      %34 = sbr.rel (0) target = $region17
    $region16: #{tpu_custom_call.1} parent=1 // pred_region
      %35 = dma.done [#allocation11], 128
    $region17: #{tpu_custom_call.1} parent=1 // pred_fallthru
      _
    %p36 = scmp.eq.s32.totalorder 0, 0
    // Predicated region
    $region18: #{tpu_custom_call.1} parent=1 // pred_check
      %p37 = pneg %p36
    $region19: #{tpu_custom_call.1} parent=1 // pred_check_branch
      %39 = sbr.rel (%p37) target = $region21
    $region20: #{tpu_custom_call.1} parent=1 // pred_region
      %vm40 = vcmask 0
      %41 = vst.msk [vmem:[#allocation2] sm:$0x1] %vm40, 0.0
      %42 = vst.msk [vmem:[#allocation3] sm:$0x1] %vm40, 0.0
      %43 = vst.msk [vmem:[#allocation4] sm:$0x1] %vm40, 0.0
      %44 = vst.msk [vmem:[#allocation5] sm:$0x1] %vm40, 0.0
      %45 = vst.msk [vmem:[#allocation6] sm:$0x1] %vm40, 0.0
    $region21: #{tpu_custom_call.1} parent=1 // pred_fallthru
      _
    %v46 = vld [vmem:[#allocation7] sm:$0xff]
    %v47 = vld [vmem:[#allocation10] sm:$0xff]
    %48 = vadd.xlane.f32.xlu0 %v46
    %v49 = vpop.xlane.xlu0 %48
    %v50 = vmul.f32 %v49, 0.0078125
    %51 = vadd.xlane.f32.xlu0 %v47
    %v52 = vpop.xlane.xlu0 %51
    %v53 = vmul.f32 %v52, 0.0078125
    %v54 = vld [vmem:[#allocation2] sm:$0x1]
    %v55 = vrot.slane %v50, 4
    %v56 = vadd.f32 %v50, %v55
    %v57 = vrot.slane %v56, 2
    %v58 = vadd.f32 %v56, %v57
    %v59 = vrot.slane %v58, 1
    %v60 = vadd.f32 %v58, %v59
    %v61 = vadd.f32 %v54, %v60
    %vm62 = vcmask 0
    %63 = vst.msk [vmem:[#allocation2] sm:$0x1] %vm62, %v61
    %v64 = vld [vmem:[#allocation3] sm:$0x1]
    %v65 = vmul.f32 %v50, %v50
    %v66 = vrot.slane %v65, 4
    %v67 = vadd.f32 %v65, %v66
    %v68 = vrot.slane %v67, 2
    %v69 = vadd.f32 %v67, %v68
    %v70 = vrot.slane %v69, 1
    %v71 = vadd.f32 %v69, %v70
    %v72 = vadd.f32 %v64, %v71
    %73 = vst.msk [vmem:[#allocation3] sm:$0x1] %vm62, %v72
    %v74 = vld [vmem:[#allocation4] sm:$0x1]
    %v75 = vrot.slane %v53, 4
    %v76 = vadd.f32 %v53, %v75
    %v77 = vrot.slane %v76, 2
    %v78 = vadd.f32 %v76, %v77
    %v79 = vrot.slane %v78, 1
    %v80 = vadd.f32 %v78, %v79
    %v81 = vadd.f32 %v74, %v80
    %82 = vst.msk [vmem:[#allocation4] sm:$0x1] %vm62, %v81
    %v83 = vld [vmem:[#allocation5] sm:$0x1]
    %v84 = vmul.f32 %v53, %v53
    %v85 = vrot.slane %v84, 4
    %v86 = vadd.f32 %v84, %v85
    %v87 = vrot.slane %v86, 2
    %v88 = vadd.f32 %v86, %v87
    %v89 = vrot.slane %v88, 1
    %v90 = vadd.f32 %v88, %v89
    %v91 = vadd.f32 %v83, %v90
    %92 = vst.msk [vmem:[#allocation5] sm:$0x1] %vm62, %v91
    // Predicated region
    $region22: #{tpu_custom_call.1} parent=1 // pred_check
      %p93 = pneg %p36
    $region23: #{tpu_custom_call.1} parent=1 // pred_check_branch
      %95 = sbr.rel (%p93) target = $region25
    $region24: #{tpu_custom_call.1} parent=1 // pred_region
      %v96 = vld [vmem:[#allocation2] sm:$0x1]
      %v97 = vmul.f32 %v96, 0.125
      %v98 = vld [vmem:[#allocation4] sm:$0x1]
      %v99 = vmul.f32 %v98, 0.125
      %v100 = vadd.f32 %v99, -1.0
      %v101 = vadd.f32 %v97, 1.0
      %v102 = vld [vmem:[#allocation3] sm:$0x1]
      %v103 = vmul.f32 %v102, 0.125
      %v104 = vmul.f32 %v100, 2.0
      %v105 = vmul.f32 %v104, %v97
      %v106 = vsub.f32 %v103, %v105
      %v107 = vmul.f32 %v100, %v100
      %v108 = vadd.f32 %v106, %v107
      %v109 = vld [vmem:[#allocation5] sm:$0x1]
      %v110 = vmul.f32 %v109, 0.125
      %v111 = vmul.f32 %v101, 2.0
      %v112 = vmul.f32 %v111, %v99
      %v113 = vsub.f32 %v110, %v112
      %v114 = vmul.f32 %v101, %v101
      %v115 = vadd.f32 %v113, %v114
      %v116 = vadd.f32 %v108, %v115
      %v117 = vmul.f32 %v116, 0.5
      %v118 = vadd.f32 %v117, 0.0
      %119 = vst.msk [vmem:[#allocation12] sm:$0x1] %vm62, %v118
    $region25: #{tpu_custom_call.1} parent=1 // pred_fallthru
      _
    // Predicated region
    $region26: #{tpu_custom_call.1} parent=1 // pred_check
      _
    $region27: #{tpu_custom_call.1} parent=1 // pred_check_branch
      %121 = sbr.rel (0) target = $region29
    $region28: #{tpu_custom_call.1} parent=1 // pred_region
      %s123 = ssub.s32 16, 16
      %124 = vsyncadd [#allocation9], %s123
      %s126 = sshll.u32 [#allocation12], 4
      %s127 = int_to_ptr.vmem [resolvable:$true] %s126
      %129 = dma.vmem_to_hbm [thread:$0]  %s127, 16, %s2, [#allocation9]
    $region29: #{tpu_custom_call.1} parent=1 // pred_fallthru
      _
    // Predicated region
    $region30: #{tpu_custom_call.1} parent=1 // pred_check
      _
    $region31: #{tpu_custom_call.1} parent=1 // pred_check_branch
      %131 = sbr.rel (0) target = $region33
    $region32: #{tpu_custom_call.1} parent=1 // pred_region
      %132 = dma.done [#allocation9], 16
    $region33: #{tpu_custom_call.1} parent=1 // pred_fallthru
      _
    %133 = vsyncpa [#allocation8], 1
    %134 = vsyncpa [#allocation11], 1
    %135 = vsyncpa [#allocation9], 1

</llo_original>
